<compile_context>
chip_gen: v6e
topology: v6e:2x2x1
jax: 0.10.0
libtpu: 0.0.40
codegen_flags: <defaults>
</compile_context>

<pallas_src>
import math
from functools import partial

import jax
import jax.numpy as jnp
from jax.experimental import pallas as pl
from jax.experimental.pallas import tpu as pltpu

# ---------------------------------------------------------------------------- config
HIDDEN = 32
NUM_HEADS = 4
HEAD_DIM = HIDDEN // NUM_HEADS             # 8
NUM_KV_HEADS = 2
NUM_KV_GROUPS = NUM_HEADS // NUM_KV_HEADS  # query heads per kv head = 2
K_SPEC = 5                                 # config.k
INTERMEDIATE = 64
ROPE_THETA = 10000.0
RMS_EPS = 1e-6

# --- bf16 weight-slab layout (128 lanes wide, static row offsets) -------------------
_WQ_COLS = NUM_KV_GROUPS * K_SPEC * HEAD_DIM      # 80 per group
_KV_COLS = 2 * NUM_KV_HEADS * HEAD_DIM            # 32
WQ_OFF = 0                                        # 2 groups x HIDDEN rows
WKV_OFF = WQ_OFF + NUM_KV_HEADS * HIDDEN          # 64
WO_OFF = WKV_OFF + 2 * HIDDEN                     # 128
WGU_OFF = WO_OFF + HIDDEN                         # 160
WD_OFF = WGU_OFF + 2 * HIDDEN                     # 224
W_ROWS = WD_OFF + INTERMEDIATE                    # 288
W_LANES = 128


# ---------------------------------------------------------------------------- helpers
def rotary_cos_sin(position_ids, head_dim, theta=ROPE_THETA):
    """LlamaRotaryEmbedding: cos/sin of shape (B, seq, head_dim)."""
    inv_freq = 1.0 / (
        theta ** (jnp.arange(0, head_dim, 2, dtype=jnp.float32) / head_dim))
    freqs = position_ids.astype(jnp.float32)[..., None] * inv_freq[None, None, :]
    emb = jnp.concatenate([freqs, freqs], axis=-1)
    return jnp.cos(emb), jnp.sin(emb)


def _rmsnorm(x, w):
    var = jnp.mean(x * x, axis=-1, keepdims=True)
    return x * jax.lax.rsqrt(var + RMS_EPS) * w


def _silu(x):
    return x * (1.0 / (1.0 + jnp.exp(-x)))


def _rotate_half(x):
    h = x.shape[-1] // 2
    return jnp.concatenate([-x[..., h:], x[..., :h]], axis=-1)


# ---------------------------------------------------------------------------- prep
def prepare_params(params):
    """Host-side, ONCE: fold RMSNorm weights + 1/sqrt(head_dim) into the projection
    weights, permute wq to kv-group-major layout, fuse gate|up, and pack every
    weight into a single bf16 slab (one DMA)."""
    H, HD, I = HIDDEN, HEAD_DIM, INTERMEDIATE
    ln_prev = params["ln_prev"].astype(jnp.float32)
    ln_v1 = params["ln_v1"].astype(jnp.float32)

    # q_proj (k*nh*hd, H): transpose, scale by 1/sqrt(hd), fold ln_prev on the input
    # dim, permute columns per kv group to (head-in-group | spec | dim) order.
    wq_t = params["wq"].astype(jnp.float32).T * (ln_prev[:, None] / math.sqrt(HD))
    hh = jnp.arange(NUM_KV_GROUPS)
    ss = jnp.arange(K_SPEC)
    dd = jnp.arange(HD)
    wq_groups = []
    for g in range(NUM_KV_HEADS):
        cols = (ss[None, :, None] * (NUM_HEADS * HD)
                + (g * NUM_KV_GROUPS + hh)[:, None, None] * HD
                + dd[None, None, :]).reshape(-1)          # (h', s, d) flattened
        wq_groups.append(wq_t[:, cols])                    # (H, 80)

    # kv_proj (2*nkv*hd, 2H): transpose; fold ln_prev into the rows multiplying the
    # normalized ie[:, :-1] half of the concatenated input.
    wkv_t = params["wkv"].astype(jnp.float32).T            # (2H, 32)
    wkv_t = jnp.concatenate([wkv_t[:H], wkv_t[H:] * ln_prev[:, None]], axis=0)

    wo_t = params["wo"].astype(jnp.float32).T               # (H, H)

    # gate|up fused: (2H, 2I); ln_v1 folded into the h_ln rows of both halves.
    def fold_top(w):                                         # torch layout (I, 2H)
        w_t = w.astype(jnp.float32).T
        return jnp.concatenate([w_t[:H] * ln_v1[:, None], w_t[H:]], axis=0)
    w_gu = jnp.concatenate([fold_top(params["wg"]), fold_top(params["wu"])], axis=1)

    wd_t = params["wd"].astype(jnp.float32).T                # (I, H)

    def pad(w, rows):
        r, c = w.shape
        return jnp.pad(w, ((0, rows - r), (0, W_LANES - c)))

    w_slab = jnp.concatenate(
        [pad(wq_groups[0], H), pad(wq_groups[1], H), pad(wkv_t, 2 * H),
         pad(wo_t, H), pad(w_gu, 2 * H), pad(wd_t, I)],
        axis=0).astype(jnp.bfloat16)
    assert w_slab.shape == (W_ROWS, W_LANES)
    return {"w_slab": w_slab}


# ---------------------------------------------------------------------------- kernel
def _decoder_kernel(x_ref, w_ref, out_ref, *, S, Lk,
                    IE_OFF, PREV_OFF, ROPE_OFF, HS_OFF):
    f32 = jnp.float32
    H, HD, K, I = HIDDEN, HEAD_DIM, K_SPEC, INTERMEDIATE
    half = HD // 2
    bf = lambda v: v.astype(jnp.bfloat16)

    # ---- static views of the two VMEM slabs -----------------------------------
    ie = x_ref[IE_OFF:IE_OFF + S, :]                  # (S, H)  raw inputs_embeds
    prev = x_ref[PREV_OFF:PREV_OFF + Lk, :]           # (Lk, H) prev_hidden_states
    cos_k = x_ref[ROPE_OFF:ROPE_OFF + Lk, 0:half]     # (Lk, hd/2)
    sin_k = x_ref[ROPE_OFF:ROPE_OFF + Lk, half:HD]
    hstate = x_ref[HS_OFF:HS_OFF + 1, :]              # (1, H)  decoder hidden_states

    # ---- prev_attn_layernorm (weight folded into wq / wkv) --------------------
    ie_n = ie * jax.lax.rsqrt(jnp.mean(ie * ie, axis=-1, keepdims=True) + RMS_EPS)
    hsn_prefix = ie_n[0:Lk, :]                        # rmsnorm_u(ie)[:, :-1]
    hs_last_n = ie_n[Lk:Lk + 1, :]                    # rmsnorm_u(ie)[:, -1:]
    ie_last = ie[Lk:Lk + 1, :]                        # raw last embedding

    # ---- kv projection (split weight: no lane concat of the inputs) -----------
    kv = (jnp.dot(bf(prev), w_ref[WKV_OFF:WKV_OFF + H, 0:_KV_COLS],
                  preferred_element_type=f32)
          + jnp.dot(bf(hsn_prefix), w_ref[WKV_OFF + H:WKV_OFF + 2 * H, 0:_KV_COLS],
                    preferred_element_type=f32))      # (Lk, 2*nkv*hd)

    def rope(x, c, s):  # half-split form == x*cos + rotate_half(x)*sin
        x1, x2 = x[:, :half], x[:, half:]
        return jnp.concatenate([x1 * c - x2 * s, x2 * c + x1 * s], axis=-1)

    # K RoPE hoisted: once per kv head
    v_off = NUM_KV_HEADS * HD
    k_rope = [rope(kv[:, g * HD:(g + 1) * HD], cos_k, sin_k)
              for g in range(NUM_KV_HEADS)]
    v_head = [kv[:, v_off + g * HD: v_off + (g + 1) * HD]
              for g in range(NUM_KV_HEADS)]

    # ---- q projection + GQA attention, batched per kv group -------------------
    cos_q = cos_k[Lk - 1:Lk, :]                       # all k spec queries use the
    sin_q = sin_k[Lk - 1:Lk, :]                       # last kv position's rotation
    xq = bf(hs_last_n)
    rows = NUM_KV_GROUPS * K                          # heads-per-group * k = 10
    o_pieces = []
    for g in range(NUM_KV_HEADS):
        # (1,32) @ (32,80): group-major weight layout -> lane-aligned 8-wide slices
        q_flat = jnp.dot(xq, w_ref[WQ_OFF + g * H:WQ_OFF + (g + 1) * H, 0:_WQ_COLS],
                         preferred_element_type=f32)  # (1, 80)
        q_g = jnp.concatenate([q_flat[:, r * HD:(r + 1) * HD] for r in range(rows)],
                              axis=0)                 # (10, hd), rows = (head', spec)
        q_g = rope(q_g, cos_q, sin_q)                 # 1/sqrt(hd) already in wq
        s_g = jnp.einsum("qd,kd->qk", bf(q_g), bf(k_rope[g]),
                         preferred_element_type=f32)  # (10, Lk)
        e = jnp.exp(s_g - jnp.max(s_g, axis=-1, keepdims=True))
        p = e * pl.reciprocal(jnp.sum(e, axis=-1, keepdims=True), approx=True)
        o_g = jnp.dot(bf(p), bf(v_head[g]), preferred_element_type=f32)   # (10, hd)
        o_pieces += [o_g[0:K, :], o_g[K:2 * K, :]]    # back to per-head pieces

    # head-major feature order == torch reshape(q_bsz, k, hidden)
    attn_cat = jnp.concatenate(o_pieces, axis=-1)     # (k, H)
    attn_o = jnp.dot(bf(attn_cat), w_ref[WO_OFF:WO_OFF + H, 0:H],
                     preferred_element_type=f32)      # (k, H)   o_proj

    # ---- chunk-0 epilogue: +embeds, post_attn_ln_v1 (folded), fused MLP --------
    chunk0 = attn_o[0:1, :] + ie_last
    h_ln = chunk0 * jax.lax.rsqrt(
        jnp.mean(chunk0 * chunk0, axis=-1, keepdims=True) + RMS_EPS)
    x_mlp = jnp.concatenate(
        [jnp.concatenate([h_ln, ie_last], axis=-1),   # gate row
         jnp.concatenate([h_ln, hstate], axis=-1)],   # up row
        axis=0)                                       # (2, 2H)
    gu = jnp.dot(bf(x_mlp), w_ref[WGU_OFF:WGU_OFF + 2 * H, 0:2 * I],
                 preferred_element_type=f32)          # (2, 2I): one lane-dense push
    gate = gu[0:1, 0:I]
    up = gu[1:2, I:2 * I]
    inter = _silu(gate) * up                          # (1, I) f32
    mlp_out = jnp.dot(bf(inter), w_ref[WD_OFF:WD_OFF + I, 0:H],
                      preferred_element_type=f32)     # (1, H)

    # ---- single full-tile store ------------------------------------------------
    out_ref[...] = jnp.concatenate([mlp_out + chunk0, attn_o[1:K, :]], axis=0)


# ---------------------------------------------------------------------------- wrapper
def xadaptive_decoder_layer(inputs_embeds, hidden_states, prev_hidden_states,
                            prepared, position_ids=None):
    B, S, H = inputs_embeds.shape
    assert B == 1, "torch reference broadcasting is only well-defined for B == 1"
    assert H == HIDDEN
    assert hidden_states.shape == (B, 1, H)
    assert prev_hidden_states.shape == (B, S - 1, H)
    Lk = S - 1

    if position_ids is None:
        position_ids = jnp.arange(Lk, dtype=jnp.int32)[None, :]
    cos, sin = rotary_cos_sin(position_ids, HEAD_DIM)      # (1, Lk, hd)

    # ---- pack the per-call activations into one f32 VMEM slab ------------------
    def r8(n):
        return (n + 7) // 8 * 8
    IE_OFF = 0
    PREV_OFF = r8(S)
    ROPE_OFF = PREV_OFF + r8(Lk)
    HS_OFF = ROPE_OFF + r8(Lk)
    X_ROWS = HS_OFF + 8

    half = HEAD_DIM // 2
    rope_tab = jnp.concatenate([cos[0, :, :half], sin[0, :, :half]], axis=-1)

    x_slab = jnp.zeros((X_ROWS, H), jnp.float32)
    x_slab = x_slab.at[IE_OFF:IE_OFF + S, :].set(inputs_embeds[0])
    x_slab = x_slab.at[PREV_OFF:PREV_OFF + Lk, :].set(prev_hidden_states[0])
    x_slab = x_slab.at[ROPE_OFF:ROPE_OFF + Lk, :HEAD_DIM].set(rope_tab)
    x_slab = x_slab.at[HS_OFF:HS_OFF + 1, :].set(hidden_states[0])

    kernel = partial(_decoder_kernel, S=S, Lk=Lk, IE_OFF=IE_OFF,
                     PREV_OFF=PREV_OFF, ROPE_OFF=ROPE_OFF, HS_OFF=HS_OFF)
    vmem = pl.BlockSpec(memory_space=pltpu.MemorySpace.VMEM)

    out = pl.pallas_call(
        kernel,
        out_shape=jax.ShapeDtypeStruct((K_SPEC, H), jnp.float32),
        in_specs=[vmem, vmem],
        out_specs=vmem,
    )(x_slab, prepared["w_slab"])

    out = out[None]                                         # (1, k, H)
    # torch returns the attention output chunked into k (B,1,H) tensors with only
    # chunk 0 passed through the MLP branch.
    return [out[:, i:i + 1, :] for i in range(K_SPEC)]


# ---------------------------------------------------------------------------- reference
def _mm_bf16(x, w):
    """torch.nn.Linear (no bias): y = x @ w.T; bf16 MXU inputs, f32 accumulation."""
    return jnp.dot(x.astype(jnp.bfloat16), w.T.astype(jnp.bfloat16),
                   preferred_element_type=jnp.float32)


def _repeat_kv(x, n_rep):
    if n_rep == 1:
        return x
    b, nkv, s, d = x.shape
    x = jnp.broadcast_to(x[:, :, None, :, :], (b, nkv, n_rep, s, d))
    return x.reshape(b, nkv * n_rep, s, d)


def ref_decoder_layer(inputs_embeds, hidden_states, prev_hidden_states,
                      params, position_ids):
    attn_in = _rmsnorm(inputs_embeds, params["ln_prev"])
    prev = jnp.concatenate([prev_hidden_states, attn_in[:, :-1]], axis=-1)
    hs = attn_in[:, -1:]
    q_bsz, q_len, _ = hs.shape
    kv_bsz, kv_len, _ = prev.shape

    q = _mm_bf16(hs, params["wq"])
    kvp = _mm_bf16(prev, params["wkv"])
    k_st, v_st = jnp.split(kvp, 2, axis=-1)

    q = jnp.swapaxes(q.reshape(q_bsz * K_SPEC, -1, NUM_HEADS, HEAD_DIM), -2, -3)
    k_st = jnp.swapaxes(k_st.reshape(kv_bsz, -1, NUM_KV_HEADS, HEAD_DIM), -2, -3)
    v_st = jnp.swapaxes(v_st.reshape(kv_bsz, -1, NUM_KV_HEADS, HEAD_DIM), -2, -3)

    cos, sin = rotary_cos_sin(position_ids, HEAD_DIM)
    cos_, sin_ = cos[:, None, ...], sin[:, None, ...]
    q = q * cos_[..., -q_len:, :] + _rotate_half(q) * sin_[..., -q_len:, :]
    k_st = k_st * cos_[..., :kv_len, :] + _rotate_half(k_st) * sin_[..., :kv_len, :]

    k_st = _repeat_kv(k_st, NUM_KV_GROUPS)
    v_st = _repeat_kv(v_st, NUM_KV_GROUPS)

    attn_w = jnp.matmul(q.astype(jnp.bfloat16),
                        jnp.swapaxes(k_st, -1, -2).astype(jnp.bfloat16),
                        preferred_element_type=jnp.float32) / math.sqrt(HEAD_DIM)
    attn_w = jax.nn.softmax(attn_w, axis=-1)
    attn_out = jnp.matmul(attn_w.astype(jnp.bfloat16), v_st.astype(jnp.bfloat16),
                          preferred_element_type=jnp.float32)
    attn_out = jnp.swapaxes(attn_out, -2, -3).reshape(q_bsz, K_SPEC, HIDDEN)
    attn_out = _mm_bf16(attn_out, params["wo"])

    chunks = [attn_out[:, i:i + 1, :] for i in range(K_SPEC)]
    ie_last = inputs_embeds[:, -1:]
    chunks[0] = chunks[0] + ie_last
    residual = chunks[0]
    h_ln = _rmsnorm(chunks[0], params["ln_v1"])
    gate = _mm_bf16(jnp.concatenate([h_ln, ie_last], axis=-1), params["wg"])
    up = _mm_bf16(jnp.concatenate([h_ln, hidden_states], axis=-1), params["wu"])
    mlp_out = _mm_bf16(_silu(gate) * up, params["wd"])
    chunks[0] = mlp_out + residual
    return chunks


# ----------------------------------------------------------------------------
if __name__ == "__main__":
    key = jax.random.PRNGKey(0)
    ks = jax.random.split(key, 11)

    B, S = 1, 9                               # kv_seq_len = S - 1 = 8
    inputs_embeds = jax.random.normal(ks[0], (B, S, HIDDEN), jnp.float32)
    hidden_states = jax.random.normal(ks[1], (B, 1, HIDDEN), jnp.float32)
    prev_hidden_states = jax.random.normal(ks[2], (B, S - 1, HIDDEN), jnp.float32)

    params = {
        # torch.nn.Linear weight shapes: (out_features, in_features), bias=False
        "wq": 0.02 * jax.random.normal(
            ks[3], (NUM_HEADS * HEAD_DIM * K_SPEC, HIDDEN), jnp.float32),
        "wkv": 0.02 * jax.random.normal(
            ks[4], (NUM_KV_HEADS * HEAD_DIM * 2, 2 * HIDDEN), jnp.float32),
        "wo": 0.02 * jax.random.normal(ks[5], (HIDDEN, HIDDEN), jnp.float32),
        "wg": 0.02 * jax.random.normal(ks[6], (INTERMEDIATE, 2 * HIDDEN), jnp.float32),
        "wu": 0.02 * jax.random.normal(ks[7], (INTERMEDIATE, 2 * HIDDEN), jnp.float32),
        "wd": 0.02 * jax.random.normal(ks[8], (HIDDEN, INTERMEDIATE), jnp.float32),
        "ln_prev": 1.0 + 0.1 * jax.random.normal(ks[9], (HIDDEN,), jnp.float32),
        "ln_v1": 1.0 + 0.1 * jax.random.normal(ks[10], (HIDDEN,), jnp.float32),
    }
    prepared = prepare_params(params)
    position_ids = jnp.arange(S - 1, dtype=jnp.int32)[None, :]

    layer_fn = jax.jit(xadaptive_decoder_layer)
    out_chunks = layer_fn(inputs_embeds, hidden_states, prev_hidden_states,
                          prepared, position_ids)
    out = jax.block_until_ready(jnp.concatenate(out_chunks, axis=1))   # (1, k, H)

    ref_chunks = ref_decoder_layer(inputs_embeds, hidden_states, prev_hidden_states,
                                   params, position_ids)
    ref = jax.block_until_ready(jnp.concatenate(ref_chunks, axis=1))

    assert out.shape == (B, K_SPEC, HIDDEN), out.shape
    max_err = float(jnp.max(jnp.abs(out - ref)))
    assert max_err < 2e-3, f"max_err={max_err}"
    print("KERNEL_OK")
</pallas_src>

<mosaic_0001>
module attributes {stable_mosaic.version = 11 : i64} {
  func.func @_decoder_kernel(%arg0: memref<40x32xf32, #tpu.memory_space<vmem>>, %arg1: memref<288x128xbf16, #tpu.memory_space<vmem>>, %arg2: memref<5x32xf32, #tpu.memory_space<vmem>>) attributes {dimension_semantics = [], scalar_prefetch = 0 : i64, scratch_operands = 0 : i64, tpu.core_type = #tpu.core_type<tc>} {
    %c0 = arith.constant 0 : index
    %c0_0 = arith.constant 0 : index
    %0 = vector.load %arg0[%c0, %c0_0] : memref<40x32xf32, #tpu.memory_space<vmem>>, vector<9x32xf32>
    %c16 = arith.constant 16 : index
    %c0_1 = arith.constant 0 : index
    %1 = vector.load %arg0[%c16, %c0_1] : memref<40x32xf32, #tpu.memory_space<vmem>>, vector<8x32xf32>
    %c24 = arith.constant 24 : index
    %c0_2 = arith.constant 0 : index
    %2 = vector.load %arg0[%c24, %c0_2] : memref<40x32xf32, #tpu.memory_space<vmem>>, vector<8x4xf32>
    %c24_3 = arith.constant 24 : index
    %c4 = arith.constant 4 : index
    %3 = vector.load %arg0[%c24_3, %c4] : memref<40x32xf32, #tpu.memory_space<vmem>>, vector<8x4xf32>
    %c32 = arith.constant 32 : index
    %c0_4 = arith.constant 0 : index
    %4 = vector.load %arg0[%c32, %c0_4] : memref<40x32xf32, #tpu.memory_space<vmem>>, vector<1x32xf32>
    %5 = arith.mulf %0, %0 : vector<9x32xf32>
    %cst = arith.constant dense<0.000000e+00> : vector<9xf32>
    %6 = vector.multi_reduction <add>, %5, %cst [1] : vector<9x32xf32> to vector<9xf32>
    %7 = vector.shape_cast %6 : vector<9xf32> to vector<9x1xf32>
    %cst_5 = arith.constant 3.200000e+01 : f32
    %8 = vector.broadcast %cst_5 : f32 to vector<9x1xf32>
    %9 = arith.divf %7, %8 : vector<9x1xf32>
    %cst_6 = arith.constant 9.99999997E-7 : f32
    %10 = vector.broadcast %cst_6 : f32 to vector<9x1xf32>
    %11 = arith.addf %9, %10 : vector<9x1xf32>
    %12 = math.rsqrt %11 : vector<9x1xf32>
    %13 = vector.broadcast %12 : vector<9x1xf32> to vector<9x32xf32>
    %14 = arith.mulf %0, %13 : vector<9x32xf32>
    %15 = vector.extract_strided_slice %14 {offsets = [0, 0], sizes = [8, 32], strides = [1, 1]} : vector<9x32xf32> to vector<8x32xf32>
    %16 = vector.extract_strided_slice %14 {offsets = [8, 0], sizes = [1, 32], strides = [1, 1]} : vector<9x32xf32> to vector<1x32xf32>
    %17 = vector.extract_strided_slice %0 {offsets = [8, 0], sizes = [1, 32], strides = [1, 1]} : vector<9x32xf32> to vector<1x32xf32>
    %18 = arith.truncf %1 : vector<8x32xf32> to vector<8x32xbf16>
    %c64 = arith.constant 64 : index
    %c0_7 = arith.constant 0 : index
    %19 = vector.load %arg1[%c64, %c0_7] : memref<288x128xbf16, #tpu.memory_space<vmem>>, vector<32x32xbf16>
    %cst_8 = arith.constant dense<0.000000e+00> : vector<8x32xf32>
    %20 = tpu.matmul %18, %19, %cst_8 {dimension_numbers = #tpu.dot_dimension_numbers<[1], [0], [0], [1], [0, 0, 1, 1], [], []>} : vector<8x32xbf16>, vector<32x32xbf16>, vector<8x32xf32> -> vector<8x32xf32>
    %21 = arith.truncf %15 : vector<8x32xf32> to vector<8x32xbf16>
    %c96 = arith.constant 96 : index
    %c0_9 = arith.constant 0 : index
    %22 = vector.load %arg1[%c96, %c0_9] : memref<288x128xbf16, #tpu.memory_space<vmem>>, vector<32x32xbf16>
    %cst_10 = arith.constant dense<0.000000e+00> : vector<8x32xf32>
    %23 = tpu.matmul %21, %22, %cst_10 {dimension_numbers = #tpu.dot_dimension_numbers<[1], [0], [0], [1], [0, 0, 1, 1], [], []>} : vector<8x32xbf16>, vector<32x32xbf16>, vector<8x32xf32> -> vector<8x32xf32>
    %24 = arith.addf %20, %23 : vector<8x32xf32>
    %25 = vector.extract_strided_slice %24 {offsets = [0, 0], sizes = [8, 8], strides = [1, 1]} : vector<8x32xf32> to vector<8x8xf32>
    %26 = vector.extract_strided_slice %25 {offsets = [0, 0], sizes = [8, 4], strides = [1, 1]} : vector<8x8xf32> to vector<8x4xf32>
    %27 = vector.extract_strided_slice %25 {offsets = [0, 4], sizes = [8, 4], strides = [1, 1]} : vector<8x8xf32> to vector<8x4xf32>
    %28 = arith.mulf %26, %2 : vector<8x4xf32>
    %29 = arith.mulf %27, %3 : vector<8x4xf32>
    %30 = arith.subf %28, %29 : vector<8x4xf32>
    %31 = arith.mulf %27, %2 : vector<8x4xf32>
    %32 = arith.mulf %26, %3 : vector<8x4xf32>
    %33 = arith.addf %31, %32 : vector<8x4xf32>
    %34 = tpu.concatenate %30, %33 in 1 : vector<8x4xf32>, vector<8x4xf32> -> vector<8x8xf32>
    %35 = vector.extract_strided_slice %24 {offsets = [0, 8], sizes = [8, 8], strides = [1, 1]} : vector<8x32xf32> to vector<8x8xf32>
    %36 = vector.extract_strided_slice %35 {offsets = [0, 0], sizes = [8, 4], strides = [1, 1]} : vector<8x8xf32> to vector<8x4xf32>
    %37 = vector.extract_strided_slice %35 {offsets = [0, 4], sizes = [8, 4], strides = [1, 1]} : vector<8x8xf32> to vector<8x4xf32>
    %38 = arith.mulf %36, %2 : vector<8x4xf32>
    %39 = arith.mulf %37, %3 : vector<8x4xf32>
    %40 = arith.subf %38, %39 : vector<8x4xf32>
    %41 = arith.mulf %37, %2 : vector<8x4xf32>
    %42 = arith.mulf %36, %3 : vector<8x4xf32>
    %43 = arith.addf %41, %42 : vector<8x4xf32>
    %44 = tpu.concatenate %40, %43 in 1 : vector<8x4xf32>, vector<8x4xf32> -> vector<8x8xf32>
    %45 = vector.extract_strided_slice %24 {offsets = [0, 16], sizes = [8, 8], strides = [1, 1]} : vector<8x32xf32> to vector<8x8xf32>
    %46 = vector.extract_strided_slice %24 {offsets = [0, 24], sizes = [8, 8], strides = [1, 1]} : vector<8x32xf32> to vector<8x8xf32>
    %47 = vector.extract_strided_slice %2 {offsets = [7, 0], sizes = [1, 4], strides = [1, 1]} : vector<8x4xf32> to vector<1x4xf32>
    %48 = vector.extract_strided_slice %3 {offsets = [7, 0], sizes = [1, 4], strides = [1, 1]} : vector<8x4xf32> to vector<1x4xf32>
    %49 = arith.truncf %16 : vector<1x32xf32> to vector<1x32xbf16>
    %c0_11 = arith.constant 0 : index
    %c0_12 = arith.constant 0 : index
    %50 = vector.load %arg1[%c0_11, %c0_12] : memref<288x128xbf16, #tpu.memory_space<vmem>>, vector<32x80xbf16>
    %cst_13 = arith.constant dense<0.000000e+00> : vector<1x80xf32>
    %51 = tpu.matmul %49, %50, %cst_13 {dimension_numbers = #tpu.dot_dimension_numbers<[1], [0], [0], [1], [0, 0, 1, 1], [], []>} : vector<1x32xbf16>, vector<32x80xbf16>, vector<1x80xf32> -> vector<1x80xf32>
    %52 = vector.extract_strided_slice %51 {offsets = [0, 0], sizes = [1, 8], strides = [1, 1]} : vector<1x80xf32> to vector<1x8xf32>
    %53 = vector.extract_strided_slice %51 {offsets = [0, 8], sizes = [1, 8], strides = [1, 1]} : vector<1x80xf32> to vector<1x8xf32>
    %54 = vector.extract_strided_slice %51 {offsets = [0, 16], sizes = [1, 8], strides = [1, 1]} : vector<1x80xf32> to vector<1x8xf32>
    %55 = vector.extract_strided_slice %51 {offsets = [0, 24], sizes = [1, 8], strides = [1, 1]} : vector<1x80xf32> to vector<1x8xf32>
    %56 = vector.extract_strided_slice %51 {offsets = [0, 32], sizes = [1, 8], strides = [1, 1]} : vector<1x80xf32> to vector<1x8xf32>
    %57 = vector.extract_strided_slice %51 {offsets = [0, 40], sizes = [1, 8], strides = [1, 1]} : vector<1x80xf32> to vector<1x8xf32>
    %58 = vector.extract_strided_slice %51 {offsets = [0, 48], sizes = [1, 8], strides = [1, 1]} : vector<1x80xf32> to vector<1x8xf32>
    %59 = vector.extract_strided_slice %51 {offsets = [0, 56], sizes = [1, 8], strides = [1, 1]} : vector<1x80xf32> to vector<1x8xf32>
    %60 = vector.extract_strided_slice %51 {offsets = [0, 64], sizes = [1, 8], strides = [1, 1]} : vector<1x80xf32> to vector<1x8xf32>
    %61 = vector.extract_strided_slice %51 {offsets = [0, 72], sizes = [1, 8], strides = [1, 1]} : vector<1x80xf32> to vector<1x8xf32>
    %62 = tpu.concatenate %52, %53, %54, %55, %56, %57, %58, %59, %60, %61 in 0 : vector<1x8xf32>, vector<1x8xf32>, vector<1x8xf32>, vector<1x8xf32>, vector<1x8xf32>, vector<1x8xf32>, vector<1x8xf32>, vector<1x8xf32>, vector<1x8xf32>, vector<1x8xf32> -> vector<10x8xf32>
    %63 = vector.extract_strided_slice %62 {offsets = [0, 0], sizes = [10, 4], strides = [1, 1]} : vector<10x8xf32> to vector<10x4xf32>
    %64 = vector.extract_strided_slice %62 {offsets = [0, 4], sizes = [10, 4], strides = [1, 1]} : vector<10x8xf32> to vector<10x4xf32>
    %65 = vector.broadcast %47 : vector<1x4xf32> to vector<10x4xf32>
    %66 = arith.mulf %63, %65 : vector<10x4xf32>
    %67 = vector.broadcast %48 : vector<1x4xf32> to vector<10x4xf32>
    %68 = arith.mulf %64, %67 : vector<10x4xf32>
    %69 = arith.subf %66, %68 : vector<10x4xf32>
    %70 = vector.broadcast %47 : vector<1x4xf32> to vector<10x4xf32>
    %71 = arith.mulf %64, %70 : vector<10x4xf32>
    %72 = vector.broadcast %48 : vector<1x4xf32> to vector<10x4xf32>
    %73 = arith.mulf %63, %72 : vector<10x4xf32>
    %74 = arith.addf %71, %73 : vector<10x4xf32>
    %75 = tpu.concatenate %69, %74 in 1 : vector<10x4xf32>, vector<10x4xf32> -> vector<10x8xf32>
    %76 = arith.truncf %75 : vector<10x8xf32> to vector<10x8xbf16>
    %77 = arith.truncf %34 : vector<8x8xf32> to vector<8x8xbf16>
    "tpu.trace_start"() <{level = 10 : i32, message = "qd,kd->qk"}> : () -> ()
    %cst_14 = arith.constant dense<0.000000e+00> : vector<10x8xf32>
    %78 = tpu.matmul %76, %77, %cst_14 {dimension_numbers = #tpu.dot_dimension_numbers<[1], [1], [0], [0], [0, 0, 1, 0], [], []>} : vector<10x8xbf16>, vector<8x8xbf16>, vector<10x8xf32> -> vector<10x8xf32>
    "tpu.trace_stop"() : () -> ()
    %cst_15 = arith.constant dense<0xFF800000> : vector<10xf32>
    %79 = vector.multi_reduction <maximumf>, %78, %cst_15 [1] : vector<10x8xf32> to vector<10xf32>
    %80 = vector.shape_cast %79 : vector<10xf32> to vector<10x1xf32>
    %81 = vector.broadcast %80 : vector<10x1xf32> to vector<10x8xf32>
    %82 = arith.subf %78, %81 : vector<10x8xf32>
    %83 = math.exp %82 : vector<10x8xf32>
    %cst_16 = arith.constant dense<0.000000e+00> : vector<10xf32>
    %84 = vector.multi_reduction <add>, %83, %cst_16 [1] : vector<10x8xf32> to vector<10xf32>
    %85 = vector.shape_cast %84 : vector<10xf32> to vector<10x1xf32>
    %86 = tpu.reciprocal %85 {approx = true} : vector<10x1xf32> -> vector<10x1xf32>
    %87 = vector.broadcast %86 : vector<10x1xf32> to vector<10x8xf32>
    %88 = arith.mulf %83, %87 : vector<10x8xf32>
    %89 = arith.truncf %88 : vector<10x8xf32> to vector<10x8xbf16>
    %90 = arith.truncf %45 : vector<8x8xf32> to vector<8x8xbf16>
    %cst_17 = arith.constant dense<0.000000e+00> : vector<10x8xf32>
    %91 = tpu.matmul %89, %90, %cst_17 {dimension_numbers = #tpu.dot_dimension_numbers<[1], [0], [0], [1], [0, 0, 1, 1], [], []>} : vector<10x8xbf16>, vector<8x8xbf16>, vector<10x8xf32> -> vector<10x8xf32>
    %92 = vector.extract_strided_slice %91 {offsets = [0, 0], sizes = [5, 8], strides = [1, 1]} : vector<10x8xf32> to vector<5x8xf32>
    %93 = vector.extract_strided_slice %91 {offsets = [5, 0], sizes = [5, 8], strides = [1, 1]} : vector<10x8xf32> to vector<5x8xf32>
    %c32_18 = arith.constant 32 : index
    %c0_19 = arith.constant 0 : index
    %94 = vector.load %arg1[%c32_18, %c0_19] : memref<288x128xbf16, #tpu.memory_space<vmem>>, vector<32x80xbf16>
    %cst_20 = arith.constant dense<0.000000e+00> : vector<1x80xf32>
    %95 = tpu.matmul %49, %94, %cst_20 {dimension_numbers = #tpu.dot_dimension_numbers<[1], [0], [0], [1], [0, 0, 1, 1], [], []>} : vector<1x32xbf16>, vector<32x80xbf16>, vector<1x80xf32> -> vector<1x80xf32>
    %96 = vector.extract_strided_slice %95 {offsets = [0, 0], sizes = [1, 8], strides = [1, 1]} : vector<1x80xf32> to vector<1x8xf32>
    %97 = vector.extract_strided_slice %95 {offsets = [0, 8], sizes = [1, 8], strides = [1, 1]} : vector<1x80xf32> to vector<1x8xf32>
    %98 = vector.extract_strided_slice %95 {offsets = [0, 16], sizes = [1, 8], strides = [1, 1]} : vector<1x80xf32> to vector<1x8xf32>
    %99 = vector.extract_strided_slice %95 {offsets = [0, 24], sizes = [1, 8], strides = [1, 1]} : vector<1x80xf32> to vector<1x8xf32>
    %100 = vector.extract_strided_slice %95 {offsets = [0, 32], sizes = [1, 8], strides = [1, 1]} : vector<1x80xf32> to vector<1x8xf32>
    %101 = vector.extract_strided_slice %95 {offsets = [0, 40], sizes = [1, 8], strides = [1, 1]} : vector<1x80xf32> to vector<1x8xf32>
    %102 = vector.extract_strided_slice %95 {offsets = [0, 48], sizes = [1, 8], strides = [1, 1]} : vector<1x80xf32> to vector<1x8xf32>
    %103 = vector.extract_strided_slice %95 {offsets = [0, 56], sizes = [1, 8], strides = [1, 1]} : vector<1x80xf32> to vector<1x8xf32>
    %104 = vector.extract_strided_slice %95 {offsets = [0, 64], sizes = [1, 8], strides = [1, 1]} : vector<1x80xf32> to vector<1x8xf32>
    %105 = vector.extract_strided_slice %95 {offsets = [0, 72], sizes = [1, 8], strides = [1, 1]} : vector<1x80xf32> to vector<1x8xf32>
    %106 = tpu.concatenate %96, %97, %98, %99, %100, %101, %102, %103, %104, %105 in 0 : vector<1x8xf32>, vector<1x8xf32>, vector<1x8xf32>, vector<1x8xf32>, vector<1x8xf32>, vector<1x8xf32>, vector<1x8xf32>, vector<1x8xf32>, vector<1x8xf32>, vector<1x8xf32> -> vector<10x8xf32>
    %107 = vector.extract_strided_slice %106 {offsets = [0, 0], sizes = [10, 4], strides = [1, 1]} : vector<10x8xf32> to vector<10x4xf32>
    %108 = vector.extract_strided_slice %106 {offsets = [0, 4], sizes = [10, 4], strides = [1, 1]} : vector<10x8xf32> to vector<10x4xf32>
    %109 = vector.broadcast %47 : vector<1x4xf32> to vector<10x4xf32>
    %110 = arith.mulf %107, %109 : vector<10x4xf32>
    %111 = vector.broadcast %48 : vector<1x4xf32> to vector<10x4xf32>
    %112 = arith.mulf %108, %111 : vector<10x4xf32>
    %113 = arith.subf %110, %112 : vector<10x4xf32>
    %114 = vector.broadcast %47 : vector<1x4xf32> to vector<10x4xf32>
    %115 = arith.mulf %108, %114 : vector<10x4xf32>
    %116 = vector.broadcast %48 : vector<1x4xf32> to vector<10x4xf32>
    %117 = arith.mulf %107, %116 : vector<10x4xf32>
    %118 = arith.addf %115, %117 : vector<10x4xf32>
    %119 = tpu.concatenate %113, %118 in 1 : vector<10x4xf32>, vector<10x4xf32> -> vector<10x8xf32>
    %120 = arith.truncf %119 : vector<10x8xf32> to vector<10x8xbf16>
    %121 = arith.truncf %44 : vector<8x8xf32> to vector<8x8xbf16>
    "tpu.trace_start"() <{level = 10 : i32, message = "qd,kd->qk"}> : () -> ()
    %cst_21 = arith.constant dense<0.000000e+00> : vector<10x8xf32>
    %122 = tpu.matmul %120, %121, %cst_21 {dimension_numbers = #tpu.dot_dimension_numbers<[1], [1], [0], [0], [0, 0, 1, 0], [], []>} : vector<10x8xbf16>, vector<8x8xbf16>, vector<10x8xf32> -> vector<10x8xf32>
    "tpu.trace_stop"() : () -> ()
    %cst_22 = arith.constant dense<0xFF800000> : vector<10xf32>
    %123 = vector.multi_reduction <maximumf>, %122, %cst_22 [1] : vector<10x8xf32> to vector<10xf32>
    %124 = vector.shape_cast %123 : vector<10xf32> to vector<10x1xf32>
    %125 = vector.broadcast %124 : vector<10x1xf32> to vector<10x8xf32>
    %126 = arith.subf %122, %125 : vector<10x8xf32>
    %127 = math.exp %126 : vector<10x8xf32>
    %cst_23 = arith.constant dense<0.000000e+00> : vector<10xf32>
    %128 = vector.multi_reduction <add>, %127, %cst_23 [1] : vector<10x8xf32> to vector<10xf32>
    %129 = vector.shape_cast %128 : vector<10xf32> to vector<10x1xf32>
    %130 = tpu.reciprocal %129 {approx = true} : vector<10x1xf32> -> vector<10x1xf32>
    %131 = vector.broadcast %130 : vector<10x1xf32> to vector<10x8xf32>
    %132 = arith.mulf %127, %131 : vector<10x8xf32>
    %133 = arith.truncf %132 : vector<10x8xf32> to vector<10x8xbf16>
    %134 = arith.truncf %46 : vector<8x8xf32> to vector<8x8xbf16>
    %cst_24 = arith.constant dense<0.000000e+00> : vector<10x8xf32>
    %135 = tpu.matmul %133, %134, %cst_24 {dimension_numbers = #tpu.dot_dimension_numbers<[1], [0], [0], [1], [0, 0, 1, 1], [], []>} : vector<10x8xbf16>, vector<8x8xbf16>, vector<10x8xf32> -> vector<10x8xf32>
    %136 = vector.extract_strided_slice %135 {offsets = [0, 0], sizes = [5, 8], strides = [1, 1]} : vector<10x8xf32> to vector<5x8xf32>
    %137 = vector.extract_strided_slice %135 {offsets = [5, 0], sizes = [5, 8], strides = [1, 1]} : vector<10x8xf32> to vector<5x8xf32>
    %138 = tpu.concatenate %92, %93, %136, %137 in 1 : vector<5x8xf32>, vector<5x8xf32>, vector<5x8xf32>, vector<5x8xf32> -> vector<5x32xf32>
    %139 = arith.truncf %138 : vector<5x32xf32> to vector<5x32xbf16>
    %c128 = arith.constant 128 : index
    %c0_25 = arith.constant 0 : index
    %140 = vector.load %arg1[%c128, %c0_25] : memref<288x128xbf16, #tpu.memory_space<vmem>>, vector<32x32xbf16>
    %cst_26 = arith.constant dense<0.000000e+00> : vector<5x32xf32>
    %141 = tpu.matmul %139, %140, %cst_26 {dimension_numbers = #tpu.dot_dimension_numbers<[1], [0], [0], [1], [0, 0, 1, 1], [], []>} : vector<5x32xbf16>, vector<32x32xbf16>, vector<5x32xf32> -> vector<5x32xf32>
    %142 = vector.extract_strided_slice %141 {offsets = [0, 0], sizes = [1, 32], strides = [1, 1]} : vector<5x32xf32> to vector<1x32xf32>
    %143 = arith.addf %142, %17 : vector<1x32xf32>
    %144 = arith.mulf %143, %143 : vector<1x32xf32>
    %cst_27 = arith.constant dense<0.000000e+00> : vector<1xf32>
    %145 = vector.multi_reduction <add>, %144, %cst_27 [1] : vector<1x32xf32> to vector<1xf32>
    %146 = vector.shape_cast %145 : vector<1xf32> to vector<1x1xf32>
    %cst_28 = arith.constant 3.200000e+01 : f32
    %147 = vector.broadcast %cst_28 : f32 to vector<1x1xf32>
    %148 = arith.divf %146, %147 : vector<1x1xf32>
    %cst_29 = arith.constant 9.99999997E-7 : f32
    %149 = vector.broadcast %cst_29 : f32 to vector<1x1xf32>
    %150 = arith.addf %148, %149 : vector<1x1xf32>
    %151 = math.rsqrt %150 : vector<1x1xf32>
    %152 = vector.broadcast %151 : vector<1x1xf32> to vector<1x32xf32>
    %153 = arith.mulf %143, %152 : vector<1x32xf32>
    %154 = tpu.concatenate %153, %17 in 1 : vector<1x32xf32>, vector<1x32xf32> -> vector<1x64xf32>
    %155 = tpu.concatenate %153, %4 in 1 : vector<1x32xf32>, vector<1x32xf32> -> vector<1x64xf32>
    %156 = tpu.concatenate %154, %155 in 0 : vector<1x64xf32>, vector<1x64xf32> -> vector<2x64xf32>
    %157 = arith.truncf %156 : vector<2x64xf32> to vector<2x64xbf16>
    %c160 = arith.constant 160 : index
    %c0_30 = arith.constant 0 : index
    %158 = vector.load %arg1[%c160, %c0_30] : memref<288x128xbf16, #tpu.memory_space<vmem>>, vector<64x128xbf16>
    %cst_31 = arith.constant dense<0.000000e+00> : vector<2x128xf32>
    %159 = tpu.matmul %157, %158, %cst_31 {dimension_numbers = #tpu.dot_dimension_numbers<[1], [0], [0], [1], [0, 0, 1, 1], [], []>} : vector<2x64xbf16>, vector<64x128xbf16>, vector<2x128xf32> -> vector<2x128xf32>
    %160 = vector.extract_strided_slice %159 {offsets = [0, 0], sizes = [1, 64], strides = [1, 1]} : vector<2x128xf32> to vector<1x64xf32>
    %161 = vector.extract_strided_slice %159 {offsets = [1, 64], sizes = [1, 64], strides = [1, 1]} : vector<2x128xf32> to vector<1x64xf32>
    %cst_32 = arith.constant 0.000000e+00 : f32
    %162 = vector.broadcast %cst_32 : f32 to vector<1x64xf32>
    %163 = arith.subf %162, %160 : vector<1x64xf32>
    %164 = math.exp %163 : vector<1x64xf32>
    %cst_33 = arith.constant 1.000000e+00 : f32
    %165 = vector.broadcast %cst_33 : f32 to vector<1x64xf32>
    %166 = arith.addf %165, %164 : vector<1x64xf32>
    %cst_34 = arith.constant 1.000000e+00 : f32
    %167 = vector.broadcast %cst_34 : f32 to vector<1x64xf32>
    %168 = arith.divf %167, %166 : vector<1x64xf32>
    %169 = arith.mulf %160, %168 : vector<1x64xf32>
    %170 = arith.mulf %169, %161 : vector<1x64xf32>
    %171 = arith.truncf %170 : vector<1x64xf32> to vector<1x64xbf16>
    %c224 = arith.constant 224 : index
    %c0_35 = arith.constant 0 : index
    %172 = vector.load %arg1[%c224, %c0_35] : memref<288x128xbf16, #tpu.memory_space<vmem>>, vector<64x32xbf16>
    %cst_36 = arith.constant dense<0.000000e+00> : vector<1x32xf32>
    %173 = tpu.matmul %171, %172, %cst_36 {dimension_numbers = #tpu.dot_dimension_numbers<[1], [0], [0], [1], [0, 0, 1, 1], [], []>} : vector<1x64xbf16>, vector<64x32xbf16>, vector<1x32xf32> -> vector<1x32xf32>
    %174 = arith.addf %173, %143 : vector<1x32xf32>
    %175 = vector.extract_strided_slice %141 {offsets = [1, 0], sizes = [4, 32], strides = [1, 1]} : vector<5x32xf32> to vector<4x32xf32>
    %176 = tpu.concatenate %174, %175 in 0 : vector<1x32xf32>, vector<4x32xf32> -> vector<5x32xf32>
    %c0_37 = arith.constant 0 : index
    %c0_38 = arith.constant 0 : index
    %177 = vector.load %arg2[%c0_37, %c0_38] : memref<5x32xf32, #tpu.memory_space<vmem>>, vector<5x32xf32>
    tpu.vector_store %arg2[%c0_37, %c0_38], %176 {strides = array<i32>} : memref<5x32xf32, #tpu.memory_space<vmem>>, vector<5x32xf32>,
    return
  }
}

</mosaic_0001>

<llo_original>
// kernel: xadaptive_decoder_layer.1
$region0: #{xadaptive_decoder_layer.1}
  #allocation0 [shape = 'u32[]', space=smem, size = 0x4, offset = 0x4, fixed_abs, tag = 'smem constant byte address 0x4 - core index']
  #allocation1 [shape = 'u32[144,128]{1,0:T(1,128)}', space=vmem, size = 0x12000, scoped, tag = 'internal scratch']
  %s0 = inlined_call_operand.vmem [shape: f32[40,32], index: 0, kind: input, shape index: {}]
  %s1 = inlined_call_operand.vmem [shape: bf16[288,128], index: 1, kind: input, shape index: {}]
  %s2 = inlined_call_operand.vmem [shape: f32[5,32], index: 2, kind: output, shape index: {}]
  %s3 = sld [smem:[#allocation0]]
  $region18: #{xadaptive_decoder_layer.1} parent=0
    _
  %s5 = ssub.s32 1, %s3
  %s6 = scalar_select 0, %s5, %s3
  // Predicated region
  $region2: #{xadaptive_decoder_layer.1} parent=0 // pred_check
    _
  $region3: #{xadaptive_decoder_layer.1} parent=0 // pred_check_branch
    %8 = sbr.rel (0) target = $region5
  $region4: #{xadaptive_decoder_layer.1} parent=0 // pred_region
    _
  $region5: #{xadaptive_decoder_layer.1} parent=0 // pred_fallthru
    _
  // Predicated region
  $region6: #{xadaptive_decoder_layer.1} parent=0 // pred_check
    _
  $region7: #{xadaptive_decoder_layer.1} parent=0 // pred_check_branch
    %10 = sbr.rel (0) target = $region9
  $region8: #{xadaptive_decoder_layer.1} parent=0 // pred_region
    _
  $region9: #{xadaptive_decoder_layer.1} parent=0 // pred_fallthru
    _
  %v12 = vld [vmem:[%s0] sm:$0xff]
  %v13 = vld [vmem:[%s0 + $0x8] sm:$0x1]
  %v14 = vld [vmem:[%s0 + $0x10] sm:$0xff]
  %v15 = vld [vmem:[%s0 + $0x18] sm:$0xff]
  %v16 = vld [vmem:[%s0 + $0x20] sm:$0x1]
  %v17 = vmul.f32 %v12, %v12
  %v18 = vmul.f32 %v13, %v13
  %vm19 = vcmask 261120
  %v20 = vsel %vm19, %v17, 0.0
  %21 = vadd.xlane.f32.xlu0 %v20
  %v22 = vpop.xlane.xlu0 %21
  %vm23 = vcmask 253952
  %v24 = vsel %vm23, %v18, 0.0
  %25 = vadd.xlane.f32.xlu0 %v24
  %v26 = vpop.xlane.xlu0 %25
  %v27 = vrcp.pop 32.0
  %v28 = vmul.f32 %v22, %v27
  %v29 = vmul.f32 %v26, %v27
  %v30 = vadd.f32 %v28, 1e-06
  %v31 = vadd.f32 %v29, 1e-06
  %v32 = vrsqrt.pop %v30
  %v33 = vrsqrt.pop %v31
  %v34 = vmul.f32 %v12, %v32
  %v35 = vmul.f32 %v13, %v33
  %v36 = vpack.c.bf16 %v14, %v14
  %v37 = vld [vmem:[%s1 + $0x20] sm:$0xf]
  %v38 = vld [vmem:[%s1 + $0x24] sm:$0xf]
  %v39 = vld [vmem:[%s1 + $0x28] sm:$0xf]
  %v40 = vld [vmem:[%s1 + $0x2c] sm:$0xf]
  %v41 = vpack.c.bf16 %v34, %v34
  %v42 = vld [vmem:[%s1 + $0x30] sm:$0xf]
  %v43 = vld [vmem:[%s1 + $0x34] sm:$0xf]
  %v44 = vld [vmem:[%s1 + $0x38] sm:$0xf]
  %v45 = vld [vmem:[%s1 + $0x3c] sm:$0xf]
  %v50 = vunpack.c.l.b16 %v42
  %v51 = vunpack.c.l.b16 %v43
  %v52 = vunpack.c.l.b16 %v44
  %v53 = vunpack.c.l.b16 %v45
  %v54 = vpack.c.b16 %v51, %v50
  %v55 = vpack.c.b16 %v53, %v52
  %v59 = vsel %vm19, %v41, 0
  %61 = vmatprep.subr.bf16.mxu0 0
  %62 = vmatpush1.bf16.msra.mxu0 0
  %63 = vmatprep.subr.bf16.mxu0 0
  %64 = vmatpush1.bf16.msra.mxu0 0
  %65 = vmatprep.subr.bf16.mxu0 0
  %66 = vmatpush1.bf16.msra.mxu0 0
  %67 = vmatprep.subr.bf16.mxu0 0
  %68 = vmatpush1.bf16.msra.mxu0 0
  %69 = vmatprep.subr.bf16.mxu0 0
  %70 = vmatpush1.bf16.msra.mxu0 0
  %71 = vmatprep.subr.bf16.mxu0 0
  %72 = vmatpush1.bf16.msra.mxu0 0
  %73 = vmatprep.subr.bf16.mxu0 0
  %74 = vmatpush1.bf16.msra.mxu0 %v55
  %75 = vmatprep.subr.bf16.mxu0 0
  %76 = vmatpush1.bf16.msra.mxu0 %v54
  %77 = vmatprep.subr.bf16.mxu0 0
  %78 = vmatpush2.bf16.msra.mxu0 0
  %79 = vmatprep.subr.bf16.mxu0 0
  %80 = vmatpush2.bf16.msra.mxu0 0
  %81 = vmatprep.subr.bf16.mxu0 0
  %82 = vmatpush2.bf16.msra.mxu0 0
  %83 = vmatprep.subr.bf16.mxu0 0
  %84 = vmatpush2.bf16.msra.mxu0 0
  %85 = vmatprep.subr.bf16.mxu0 0
  %86 = vmatpush2.bf16.msra.mxu0 0
  %87 = vmatprep.subr.bf16.mxu0 0
  %88 = vmatpush2.bf16.msra.mxu0 0
  %89 = vmatprep.subr.bf16.mxu0 0
  %90 = vmatpush2.bf16.msra.mxu0 0
  %91 = vmatprep.subr.bf16.mxu0 0
  %92 = vmatpush2.bf16.msra.mxu0 0
  %93 = vmatprep.mubr.bf16.mxu0 0
  %94 = vmatmul.mubr.bf16.gmra.mxu0 %v59
  %v95 = vpop.f32.mrf.mxu0
  %v96 = vadd.f32 0.0, %v95
  %v97 = vpop.f32.mrf.mxu0
  %v98 = vpop.f32.mrf.mxu0
  %v99 = vpop.f32.mrf.mxu0
  %100 = vdwg.mxu0
  %v105 = vunpack.c.l.b16 %v37
  %v106 = vunpack.c.l.b16 %v38
  %v107 = vunpack.c.l.b16 %v39
  %v108 = vunpack.c.l.b16 %v40
  %v109 = vpack.c.b16 %v106, %v105
  %v110 = vpack.c.b16 %v108, %v107
  %v114 = vsel %vm19, %v36, 0
  %116 = vmatprep.subr.bf16.mxu0 0
  %117 = vmatpush1.bf16.msra.mxu0 0
  %118 = vmatprep.subr.bf16.mxu0 0
  %119 = vmatpush1.bf16.msra.mxu0 0
  %120 = vmatprep.subr.bf16.mxu0 0
  %121 = vmatpush1.bf16.msra.mxu0 0
  %122 = vmatprep.subr.bf16.mxu0 0
  %123 = vmatpush1.bf16.msra.mxu0 0
  %124 = vmatprep.subr.bf16.mxu0 0
  %125 = vmatpush1.bf16.msra.mxu0 0
  %126 = vmatprep.subr.bf16.mxu0 0
  %127 = vmatpush1.bf16.msra.mxu0 0
  %128 = vmatprep.subr.bf16.mxu0 0
  %129 = vmatpush1.bf16.msra.mxu0 %v110
  %130 = vmatprep.subr.bf16.mxu0 0
  %131 = vmatpush1.bf16.msra.mxu0 %v109
  %132 = vmatprep.subr.bf16.mxu0 0
  %133 = vmatpush2.bf16.msra.mxu0 0
  %134 = vmatprep.subr.bf16.mxu0 0
  %135 = vmatpush2.bf16.msra.mxu0 0
  %136 = vmatprep.subr.bf16.mxu0 0
  %137 = vmatpush2.bf16.msra.mxu0 0
  %138 = vmatprep.subr.bf16.mxu0 0
  %139 = vmatpush2.bf16.msra.mxu0 0
  %140 = vmatprep.subr.bf16.mxu0 0
  %141 = vmatpush2.bf16.msra.mxu0 0
  %142 = vmatprep.subr.bf16.mxu0 0
  %143 = vmatpush2.bf16.msra.mxu0 0
  %144 = vmatprep.subr.bf16.mxu0 0
  %145 = vmatpush2.bf16.msra.mxu0 0
  %146 = vmatprep.subr.bf16.mxu0 0
  %147 = vmatpush2.bf16.msra.mxu0 0
  %148 = vmatprep.mubr.bf16.mxu0 0
  %149 = vmatmul.mubr.bf16.gmra.mxu0 %v114
  %v150 = vpop.f32.mrf.mxu0
  %v151 = vadd.f32 %v96, %v150
  %v152 = vpop.f32.mrf.mxu0
  %v153 = vpop.f32.mrf.mxu0
  %v154 = vpop.f32.mrf.mxu0
  %155 = vdwg.mxu0
  %v156 = vmul.f32 %v151, %v15
  %158 = vrot.lane.b32.xlu0 %v156, 124
  %v159 = vpop.permute.xlu0 %158
  %v161 = vsub.f32 %v156, %v159
  %163 = vrot.lane.b32.xlu0 %v15, 4
  %v164 = vpop.permute.xlu0 %163
  %v166 = vmul.f32 %v151, %v164
  %167 = vrot.lane.b32.xlu0 %v15, 124
  %v168 = vpop.permute.xlu0 %167
  %v170 = vmul.f32 %v151, %v168
  %172 = vrot.lane.b32.xlu0 %v170, 4
  %v173 = vpop.permute.xlu0 %172
  %v175 = vadd.f32 %v166, %v173
  %vm176 = vcmask 31744
  %v177 = vsel %vm176, %v161, %v175
  %178 = vrot.lane.b32.xlu0 %v15, 8
  %v179 = vpop.permute.xlu0 %178
  %v181 = vmul.f32 %v151, %v179
  %183 = vrot.lane.b32.xlu0 %v181, 124
  %v184 = vpop.permute.xlu0 %183
  %v186 = vsub.f32 %v181, %v184
  %187 = vrot.lane.b32.xlu0 %v15, 12
  %v188 = vpop.permute.xlu0 %187
  %v190 = vmul.f32 %v151, %v188
  %192 = vrot.lane.b32.xlu0 %v166, 4
  %v193 = vpop.permute.xlu0 %192
  %v195 = vadd.f32 %v190, %v193
  %197 = vrot.lane.b32.xlu0 %v186, 120
  %v198 = vpop.permute.xlu0 %197
  %201 = vrot.lane.b32.xlu0 %v195, 120
  %v202 = vpop.permute.xlu0 %201
  %v204 = vsel %vm176, %v198, %v202
  %v205 = vpack.c.bf16 %v35, %v35
  %v206 = vld [vmem:[%s1] sm:$0xf]
  %v207 = vld [vmem:[%s1 + $0x4] sm:$0xf]
  %v208 = vld [vmem:[%s1 + $0x8] sm:$0xf]
  %v209 = vld [vmem:[%s1 + $0xc] sm:$0xf]
  %v214 = vunpack.c.l.b16 %v206
  %v215 = vunpack.c.l.b16 %v207
  %v216 = vunpack.c.l.b16 %v208
  %v217 = vunpack.c.l.b16 %v209
  %v218 = vpack.c.b16 %v215, %v214
  %v219 = vpack.c.b16 %v217, %v216
  %v223 = vsel %vm19, %v205, 0
  %225 = vmatprep.subr.bf16.mxu0 0
  %226 = vmatpush1.bf16.msra.mxu0 0
  %227 = vmatprep.subr.bf16.mxu0 0
  %228 = vmatpush1.bf16.msra.mxu0 0
  %229 = vmatprep.subr.bf16.mxu0 0
  %230 = vmatpush1.bf16.msra.mxu0 0
  %231 = vmatprep.subr.bf16.mxu0 0
  %232 = vmatpush1.bf16.msra.mxu0 0
  %233 = vmatprep.subr.bf16.mxu0 0
  %234 = vmatpush1.bf16.msra.mxu0 0
  %235 = vmatprep.subr.bf16.mxu0 0
  %236 = vmatpush1.bf16.msra.mxu0 0
  %237 = vmatprep.subr.bf16.mxu0 0
  %238 = vmatpush1.bf16.msra.mxu0 %v219
  %239 = vmatprep.subr.bf16.mxu0 0
  %240 = vmatpush1.bf16.msra.mxu0 %v218
  %241 = vmatprep.subr.bf16.mxu0 0
  %242 = vmatpush2.bf16.msra.mxu0 0
  %243 = vmatprep.subr.bf16.mxu0 0
  %244 = vmatpush2.bf16.msra.mxu0 0
  %245 = vmatprep.subr.bf16.mxu0 0
  %246 = vmatpush2.bf16.msra.mxu0 0
  %247 = vmatprep.subr.bf16.mxu0 0
  %248 = vmatpush2.bf16.msra.mxu0 0
  %249 = vmatprep.subr.bf16.mxu0 0
  %250 = vmatpush2.bf16.msra.mxu0 0
  %251 = vmatprep.subr.bf16.mxu0 0
  %252 = vmatpush2.bf16.msra.mxu0 0
  %253 = vmatprep.subr.bf16.mxu0 0
  %254 = vmatpush2.bf16.msra.mxu0 0
  %255 = vmatprep.subr.bf16.mxu0 0
  %256 = vmatpush2.bf16.msra.mxu0 0
  %257 = vmatprep.mubr.bf16.mxu0 0
  %258 = vmatmul.mubr.bf16.gmra.mxu0 %v223
  %v259 = vpop.f32.mrf.mxu0
  %v260 = vadd.f32 0.0, %v259
  %v261 = vpop.f32.mrf.mxu0
  %v262 = vpop.f32.mrf.mxu0
  %v263 = vpop.f32.mrf.mxu0
  %264 = vdwg.mxu0
  %v266 = vrot.slane %v260, 7
  %267 = vrot.lane.b32.xlu0 %v266, 120
  %v268 = vpop.permute.xlu0 %267
  %v270 = vrot.slane %v260, 6
  %271 = vrot.lane.b32.xlu0 %v270, 112
  %v272 = vpop.permute.xlu0 %271
  %v274 = vrot.slane %v260, 5
  %275 = vrot.lane.b32.xlu0 %v274, 104
  %v276 = vpop.permute.xlu0 %275
  %v278 = vrot.slane %v260, 4
  %279 = vrot.lane.b32.xlu0 %v278, 96
  %v280 = vpop.permute.xlu0 %279
  %v282 = vrot.slane %v260, 3
  %283 = vrot.lane.b32.xlu0 %v282, 88
  %v284 = vpop.permute.xlu0 %283
  %v286 = vrot.slane %v260, 2
  %287 = vrot.lane.b32.xlu0 %v286, 80
  %v288 = vpop.permute.xlu0 %287
  %v290 = vrot.slane %v260, 1
  %291 = vrot.lane.b32.xlu0 %v290, 72
  %v292 = vpop.permute.xlu0 %291
  %294 = vrot.lane.b32.xlu0 %v260, 64
  %v295 = vpop.permute.xlu0 %294
  %297 = vrot.lane.b32.xlu0 %v266, 56
  %v298 = vpop.permute.xlu0 %297
  %vm300 = vcmask 1040384
  %v301 = vsel %vm300, %v260, %v268
  %vm302 = vcmask 1041408
  %v303 = vsel %vm302, %v301, %v272
  %vm304 = vcmask 1042432
  %v305 = vsel %vm304, %v303, %v276
  %vm306 = vcmask 1043456
  %v307 = vsel %vm306, %v305, %v280
  %vm308 = vcmask 1044480
  %v309 = vsel %vm308, %v307, %v284
  %vm310 = vcmask 1045504
  %v311 = vsel %vm310, %v309, %v288
  %vm312 = vcmask 1046528
  %v313 = vsel %vm312, %v311, %v292
  %v314 = vsel %vm300, %v295, %v298
  %v315 = vlaneseq
  %v316 = vshrl.u32 %v315, 7
  %v317 = vsub.s32 7, %v316
  %v318 = vrot.slane %v15, %v317
  %v319 = vmul.f32 %v313, %v318
  %v320 = vmul.f32 %v314, %v318
  %323 = vrot.lane.b32.xlu0 %v319, 124
  %v324 = vpop.permute.xlu0 %323
  %325 = vrot.lane.b32.xlu0 %v320, 124
  %v326 = vpop.permute.xlu0 %325
  %v329 = vsub.f32 %v319, %v324
  %v330 = vsub.f32 %v320, %v326
  %332 = vrot.lane.b32.xlu0 %v318, 4
  %v333 = vpop.permute.xlu0 %332
  %v335 = vmul.f32 %v313, %v333
  %v336 = vmul.f32 %v314, %v333
  %337 = vrot.lane.b32.xlu0 %v318, 124
  %v338 = vpop.permute.xlu0 %337
  %v340 = vmul.f32 %v313, %v338
  %v341 = vmul.f32 %v314, %v338
  %344 = vrot.lane.b32.xlu0 %v340, 4
  %v345 = vpop.permute.xlu0 %344
  %346 = vrot.lane.b32.xlu0 %v341, 4
  %v347 = vpop.permute.xlu0 %346
  %v350 = vadd.f32 %v335, %v345
  %v351 = vadd.f32 %v336, %v347
  %v352 = vsel %vm176, %v329, %v350
  %v353 = vsel %vm176, %v330, %v351
  %v354 = vpack.c.bf16 %v353, %v352
  %v355 = vpack.c.bf16 %v177, %v177
  %vm356 = vcmask 64512
  %v358 = vsel %vm356, %v354, 0
  %v361 = vsel %vm356, %v355, 0
  %363 = vmatprep.subr.bf16.mxu0 0
  %364 = vmatpush1.bf16.xpose.msra.mxu0 0
  %365 = vmatprep.subr.bf16.mxu0 0
  %366 = vmatpush1.bf16.xpose.msra.mxu0 0
  %367 = vmatprep.subr.bf16.mxu0 0
  %368 = vmatpush1.bf16.xpose.msra.mxu0 0
  %369 = vmatprep.subr.bf16.mxu0 0
  %370 = vmatpush1.bf16.xpose.msra.mxu0 0
  %371 = vmatprep.subr.bf16.mxu0 0
  %372 = vmatpush1.bf16.xpose.msra.mxu0 0
  %373 = vmatprep.subr.bf16.mxu0 0
  %374 = vmatpush1.bf16.xpose.msra.mxu0 0
  %375 = vmatprep.subr.bf16.mxu0 0
  %376 = vmatpush1.bf16.xpose.msra.mxu0 0
  %377 = vmatprep.subr.bf16.mxu0 0
  %378 = vmatpush1.bf16.xpose.msra.mxu0 %v361
  %379 = vmatprep.subr.bf16.mxu0 0
  %380 = vmatpush2.bf16.xpose.msra.mxu0 0
  %381 = vmatprep.subr.bf16.mxu0 0
  %382 = vmatpush2.bf16.xpose.msra.mxu0 0
  %383 = vmatprep.subr.bf16.mxu0 0
  %384 = vmatpush2.bf16.xpose.msra.mxu0 0
  %385 = vmatprep.subr.bf16.mxu0 0
  %386 = vmatpush2.bf16.xpose.msra.mxu0 0
  %387 = vmatprep.subr.bf16.mxu0 0
  %388 = vmatpush2.bf16.xpose.msra.mxu0 0
  %389 = vmatprep.subr.bf16.mxu0 0
  %390 = vmatpush2.bf16.xpose.msra.mxu0 0
  %391 = vmatprep.subr.bf16.mxu0 0
  %392 = vmatpush2.bf16.xpose.msra.mxu0 0
  %393 = vmatprep.subr.bf16.mxu0 0
  %394 = vmatpush2.bf16.xpose.msra.mxu0 0
  %395 = vmatprep.mubr.bf16.mxu0 0
  %396 = vmatmul.mubr.bf16.gmra.mxu0 %v358
  %v397 = vpop.f32.mrf.mxu0
  %v398 = vadd.f32 0.0, %v397
  %v399 = vpop.f32.mrf.mxu0
  %v400 = vpop.f32.mrf.mxu0
  %v401 = vadd.f32 0.0, %v400
  %v402 = vpop.f32.mrf.mxu0
  %403 = vdwg.mxu0
  %v404 = vsel %vm356, %v398, -inf
  %405 = vmax.xlane.f32.xlu0 %v404
  %v406 = vpop.xlane.xlu0 %405
  %vm407 = vcmask 58368
  %v408 = vsel %vm407, %v401, -inf
  %409 = vmax.xlane.f32.xlu0 %v408
  %v410 = vpop.xlane.xlu0 %409
  %v411 = vsub.f32 %v398, %v406
  %v412 = vsub.f32 %v401, %v410
  %v413 = vmul.f32 %v411, 1.442695
  %v414 = vpow.pop %v413
  %v415 = vmul.f32 %v412, 1.442695
  %v416 = vpow.pop %v415
  %v417 = vsel %vm356, %v414, 0.0
  %418 = vadd.xlane.f32.xlu0 %v417
  %v419 = vpop.xlane.xlu0 %418
  %v420 = vsel %vm407, %v416, 0.0
  %421 = vadd.xlane.f32.xlu0 %v420
  %v422 = vpop.xlane.xlu0 %421
  %v423 = vrcp.pop %v419
  %v424 = vrcp.pop %v422
  %v425 = vmul.f32 %v414, %v423
  %v426 = vmul.f32 %v416, %v424
  %v427 = vpack.c.bf16 %v426, %v425
  %v428 = vpack.c.bf16 %v151, %v151
  %430 = vrot.lane.b32.xlu0 %v428, 112
  %v431 = vpop.permute.xlu0 %430
  %v433 = vsel %vm356, %v427, 0
  %v436 = vsel %vm306, %v431, 0
  %438 = vmatprep.subr.bf16.mxu0 0
  %439 = vmatpush1.bf16.msra.mxu0 0
  %440 = vmatprep.subr.bf16.mxu0 0
  %441 = vmatpush1.bf16.msra.mxu0 0
  %442 = vmatprep.subr.bf16.mxu0 0
  %443 = vmatpush1.bf16.msra.mxu0 0
  %444 = vmatprep.subr.bf16.mxu0 0
  %445 = vmatpush1.bf16.msra.mxu0 0
  %446 = vmatprep.subr.bf16.mxu0 0
  %447 = vmatpush1.bf16.msra.mxu0 0
  %448 = vmatprep.subr.bf16.mxu0 0
  %449 = vmatpush1.bf16.msra.mxu0 0
  %450 = vmatprep.subr.bf16.mxu0 0
  %451 = vmatpush1.bf16.msra.mxu0 0
  %452 = vmatprep.subr.bf16.mxu0 0
  %453 = vmatpush1.bf16.msra.mxu0 %v436
  %454 = vmatprep.subr.bf16.mxu0 0
  %455 = vmatpush2.bf16.msra.mxu0 0
  %456 = vmatprep.subr.bf16.mxu0 0
  %457 = vmatpush2.bf16.msra.mxu0 0
  %458 = vmatprep.subr.bf16.mxu0 0
  %459 = vmatpush2.bf16.msra.mxu0 0
  %460 = vmatprep.subr.bf16.mxu0 0
  %461 = vmatpush2.bf16.msra.mxu0 0
  %462 = vmatprep.subr.bf16.mxu0 0
  %463 = vmatpush2.bf16.msra.mxu0 0
  %464 = vmatprep.subr.bf16.mxu0 0
  %465 = vmatpush2.bf16.msra.mxu0 0
  %466 = vmatprep.subr.bf16.mxu0 0
  %467 = vmatpush2.bf16.msra.mxu0 0
  %468 = vmatprep.subr.bf16.mxu0 0
  %469 = vmatpush2.bf16.msra.mxu0 0
  %470 = vmatprep.mubr.bf16.mxu0 0
  %471 = vmatmul.mubr.bf16.gmra.mxu0 %v433
  %v472 = vpop.f32.mrf.mxu0
  %v473 = vadd.f32 0.0, %v472
  %v474 = vpop.f32.mrf.mxu0
  %v475 = vpop.f32.mrf.mxu0
  %v476 = vadd.f32 0.0, %v475
  %v477 = vpop.f32.mrf.mxu0
  %478 = vdwg.mxu0
  %v479 = vld [vmem:[%s1 + $0x10] sm:$0xf]
  %v480 = vld [vmem:[%s1 + $0x14] sm:$0xf]
  %v481 = vld [vmem:[%s1 + $0x18] sm:$0xf]
  %v482 = vld [vmem:[%s1 + $0x1c] sm:$0xf]
  %v487 = vunpack.c.l.b16 %v479
  %v488 = vunpack.c.l.b16 %v480
  %v489 = vunpack.c.l.b16 %v481
  %v490 = vunpack.c.l.b16 %v482
  %v491 = vpack.c.b16 %v488, %v487
  %v492 = vpack.c.b16 %v490, %v489
  %495 = vmatprep.subr.bf16.mxu0 0
  %496 = vmatpush1.bf16.msra.mxu0 0
  %497 = vmatprep.subr.bf16.mxu0 0
  %498 = vmatpush1.bf16.msra.mxu0 0
  %499 = vmatprep.subr.bf16.mxu0 0
  %500 = vmatpush1.bf16.msra.mxu0 0
  %501 = vmatprep.subr.bf16.mxu0 0
  %502 = vmatpush1.bf16.msra.mxu0 0
  %503 = vmatprep.subr.bf16.mxu0 0
  %504 = vmatpush1.bf16.msra.mxu0 0
  %505 = vmatprep.subr.bf16.mxu0 0
  %506 = vmatpush1.bf16.msra.mxu0 0
  %507 = vmatprep.subr.bf16.mxu0 0
  %508 = vmatpush1.bf16.msra.mxu0 %v492
  %509 = vmatprep.subr.bf16.mxu0 0
  %510 = vmatpush1.bf16.msra.mxu0 %v491
  %511 = vmatprep.subr.bf16.mxu0 0
  %512 = vmatpush2.bf16.msra.mxu0 0
  %513 = vmatprep.subr.bf16.mxu0 0
  %514 = vmatpush2.bf16.msra.mxu0 0
  %515 = vmatprep.subr.bf16.mxu0 0
  %516 = vmatpush2.bf16.msra.mxu0 0
  %517 = vmatprep.subr.bf16.mxu0 0
  %518 = vmatpush2.bf16.msra.mxu0 0
  %519 = vmatprep.subr.bf16.mxu0 0
  %520 = vmatpush2.bf16.msra.mxu0 0
  %521 = vmatprep.subr.bf16.mxu0 0
  %522 = vmatpush2.bf16.msra.mxu0 0
  %523 = vmatprep.subr.bf16.mxu0 0
  %524 = vmatpush2.bf16.msra.mxu0 0
  %525 = vmatprep.subr.bf16.mxu0 0
  %526 = vmatpush2.bf16.msra.mxu0 0
  %527 = vmatprep.mubr.bf16.mxu0 0
  %528 = vmatmul.mubr.bf16.gmra.mxu0 %v223
  %v529 = vpop.f32.mrf.mxu0
  %v530 = vadd.f32 0.0, %v529
  %v531 = vpop.f32.mrf.mxu0
  %v532 = vpop.f32.mrf.mxu0
  %v533 = vpop.f32.mrf.mxu0
  %534 = vdwg.mxu0
  %v536 = vrot.slane %v530, 7
  %537 = vrot.lane.b32.xlu0 %v536, 120
  %v538 = vpop.permute.xlu0 %537
  %v540 = vrot.slane %v530, 6
  %541 = vrot.lane.b32.xlu0 %v540, 112
  %v542 = vpop.permute.xlu0 %541
  %v544 = vrot.slane %v530, 5
  %545 = vrot.lane.b32.xlu0 %v544, 104
  %v546 = vpop.permute.xlu0 %545
  %v548 = vrot.slane %v530, 4
  %549 = vrot.lane.b32.xlu0 %v548, 96
  %v550 = vpop.permute.xlu0 %549
  %v552 = vrot.slane %v530, 3
  %553 = vrot.lane.b32.xlu0 %v552, 88
  %v554 = vpop.permute.xlu0 %553
  %v556 = vrot.slane %v530, 2
  %557 = vrot.lane.b32.xlu0 %v556, 80
  %v558 = vpop.permute.xlu0 %557
  %v560 = vrot.slane %v530, 1
  %561 = vrot.lane.b32.xlu0 %v560, 72
  %v562 = vpop.permute.xlu0 %561
  %564 = vrot.lane.b32.xlu0 %v530, 64
  %v565 = vpop.permute.xlu0 %564
  %567 = vrot.lane.b32.xlu0 %v536, 56
  %v568 = vpop.permute.xlu0 %567
  %v570 = vsel %vm300, %v530, %v538
  %v571 = vsel %vm302, %v570, %v542
  %v572 = vsel %vm304, %v571, %v546
  %v573 = vsel %vm306, %v572, %v550
  %v574 = vsel %vm308, %v573, %v554
  %v575 = vsel %vm310, %v574, %v558
  %v576 = vsel %vm312, %v575, %v562
  %v577 = vsel %vm300, %v565, %v568
  %v578 = vmul.f32 %v576, %v318
  %v579 = vmul.f32 %v577, %v318
  %582 = vrot.lane.b32.xlu0 %v578, 124
  %v583 = vpop.permute.xlu0 %582
  %584 = vrot.lane.b32.xlu0 %v579, 124
  %v585 = vpop.permute.xlu0 %584
  %v588 = vsub.f32 %v578, %v583
  %v589 = vsub.f32 %v579, %v585
  %v590 = vmul.f32 %v576, %v333
  %v591 = vmul.f32 %v577, %v333
  %v592 = vmul.f32 %v576, %v338
  %v593 = vmul.f32 %v577, %v338
  %596 = vrot.lane.b32.xlu0 %v592, 4
  %v597 = vpop.permute.xlu0 %596
  %598 = vrot.lane.b32.xlu0 %v593, 4
  %v599 = vpop.permute.xlu0 %598
  %v602 = vadd.f32 %v590, %v597
  %v603 = vadd.f32 %v591, %v599
  %v604 = vsel %vm176, %v588, %v602
  %v605 = vsel %vm176, %v589, %v603
  %v606 = vpack.c.bf16 %v605, %v604
  %v607 = vpack.c.bf16 %v204, %v204
  %v609 = vsel %vm356, %v606, 0
  %v612 = vsel %vm356, %v607, 0
  %614 = vmatprep.subr.bf16.mxu0 0
  %615 = vmatpush1.bf16.xpose.msra.mxu0 0
  %616 = vmatprep.subr.bf16.mxu0 0
  %617 = vmatpush1.bf16.xpose.msra.mxu0 0
  %618 = vmatprep.subr.bf16.mxu0 0
  %619 = vmatpush1.bf16.xpose.msra.mxu0 0
  %620 = vmatprep.subr.bf16.mxu0 0
  %621 = vmatpush1.bf16.xpose.msra.mxu0 0
  %622 = vmatprep.subr.bf16.mxu0 0
  %623 = vmatpush1.bf16.xpose.msra.mxu0 0
  %624 = vmatprep.subr.bf16.mxu0 0
  %625 = vmatpush1.bf16.xpose.msra.mxu0 0
  %626 = vmatprep.subr.bf16.mxu0 0
  %627 = vmatpush1.bf16.xpose.msra.mxu0 0
  %628 = vmatprep.subr.bf16.mxu0 0
  %629 = vmatpush1.bf16.xpose.msra.mxu0 %v612
  %630 = vmatprep.subr.bf16.mxu0 0
  %631 = vmatpush2.bf16.xpose.msra.mxu0 0
  %632 = vmatprep.subr.bf16.mxu0 0
  %633 = vmatpush2.bf16.xpose.msra.mxu0 0
  %634 = vmatprep.subr.bf16.mxu0 0
  %635 = vmatpush2.bf16.xpose.msra.mxu0 0
  %636 = vmatprep.subr.bf16.mxu0 0
  %637 = vmatpush2.bf16.xpose.msra.mxu0 0
  %638 = vmatprep.subr.bf16.mxu0 0
  %639 = vmatpush2.bf16.xpose.msra.mxu0 0
  %640 = vmatprep.subr.bf16.mxu0 0
  %641 = vmatpush2.bf16.xpose.msra.mxu0 0
  %642 = vmatprep.subr.bf16.mxu0 0
  %643 = vmatpush2.bf16.xpose.msra.mxu0 0
  %644 = vmatprep.subr.bf16.mxu0 0
  %645 = vmatpush2.bf16.xpose.msra.mxu0 0
  %646 = vmatprep.mubr.bf16.mxu0 0
  %647 = vmatmul.mubr.bf16.gmra.mxu0 %v609
  %v648 = vpop.f32.mrf.mxu0
  %v649 = vadd.f32 0.0, %v648
  %v650 = vpop.f32.mrf.mxu0
  %v651 = vpop.f32.mrf.mxu0
  %v652 = vadd.f32 0.0, %v651
  %v653 = vpop.f32.mrf.mxu0
  %654 = vdwg.mxu0
  %v655 = vsel %vm356, %v649, -inf
  %656 = vmax.xlane.f32.xlu0 %v655
  %v657 = vpop.xlane.xlu0 %656
  %v658 = vsel %vm407, %v652, -inf
  %659 = vmax.xlane.f32.xlu0 %v658
  %v660 = vpop.xlane.xlu0 %659
  %v661 = vsub.f32 %v649, %v657
  %v662 = vsub.f32 %v652, %v660
  %v663 = vmul.f32 %v661, 1.442695
  %v664 = vpow.pop %v663
  %v665 = vmul.f32 %v662, 1.442695
  %v666 = vpow.pop %v665
  %v667 = vsel %vm356, %v664, 0.0
  %668 = vadd.xlane.f32.xlu0 %v667
  %v669 = vpop.xlane.xlu0 %668
  %v670 = vsel %vm407, %v666, 0.0
  %671 = vadd.xlane.f32.xlu0 %v670
  %v672 = vpop.xlane.xlu0 %671
  %v673 = vrcp.pop %v669
  %v674 = vrcp.pop %v672
  %v675 = vmul.f32 %v664, %v673
  %v676 = vmul.f32 %v666, %v674
  %v677 = vpack.c.bf16 %v676, %v675
  %678 = vrot.lane.b32.xlu0 %v428, 104
  %v679 = vpop.permute.xlu0 %678
  %v681 = vsel %vm356, %v677, 0
  %v684 = vsel %vm306, %v679, 0
  %686 = vmatprep.subr.bf16.mxu0 0
  %687 = vmatpush1.bf16.msra.mxu0 0
  %688 = vmatprep.subr.bf16.mxu0 0
  %689 = vmatpush1.bf16.msra.mxu0 0
  %690 = vmatprep.subr.bf16.mxu0 0
  %691 = vmatpush1.bf16.msra.mxu0 0
  %692 = vmatprep.subr.bf16.mxu0 0
  %693 = vmatpush1.bf16.msra.mxu0 0
  %694 = vmatprep.subr.bf16.mxu0 0
  %695 = vmatpush1.bf16.msra.mxu0 0
  %696 = vmatprep.subr.bf16.mxu0 0
  %697 = vmatpush1.bf16.msra.mxu0 0
  %698 = vmatprep.subr.bf16.mxu0 0
  %699 = vmatpush1.bf16.msra.mxu0 0
  %700 = vmatprep.subr.bf16.mxu0 0
  %701 = vmatpush1.bf16.msra.mxu0 %v684
  %702 = vmatprep.subr.bf16.mxu0 0
  %703 = vmatpush2.bf16.msra.mxu0 0
  %704 = vmatprep.subr.bf16.mxu0 0
  %705 = vmatpush2.bf16.msra.mxu0 0
  %706 = vmatprep.subr.bf16.mxu0 0
  %707 = vmatpush2.bf16.msra.mxu0 0
  %708 = vmatprep.subr.bf16.mxu0 0
  %709 = vmatpush2.bf16.msra.mxu0 0
  %710 = vmatprep.subr.bf16.mxu0 0
  %711 = vmatpush2.bf16.msra.mxu0 0
  %712 = vmatprep.subr.bf16.mxu0 0
  %713 = vmatpush2.bf16.msra.mxu0 0
  %714 = vmatprep.subr.bf16.mxu0 0
  %715 = vmatpush2.bf16.msra.mxu0 0
  %716 = vmatprep.subr.bf16.mxu0 0
  %717 = vmatpush2.bf16.msra.mxu0 0
  %718 = vmatprep.mubr.bf16.mxu0 0
  %719 = vmatmul.mubr.bf16.gmra.mxu0 %v681
  %v720 = vpop.f32.mrf.mxu0
  %v721 = vadd.f32 0.0, %v720
  %v722 = vpop.f32.mrf.mxu0
  %v723 = vpop.f32.mrf.mxu0
  %v724 = vadd.f32 0.0, %v723
  %v725 = vpop.f32.mrf.mxu0
  %726 = vdwg.mxu0
  %v729 = vrot.slane %v473, 5
  %v730 = vrot.slane %v476, 5
  %v731 = vsel %vm304, %v729, %v730
  %732 = vrot.lane.b32.xlu0 %v731, 8
  %v733 = vpop.permute.xlu0 %732
  %736 = vrot.lane.b32.xlu0 %v721, 16
  %v737 = vpop.permute.xlu0 %736
  %v740 = vrot.slane %v721, 5
  %v741 = vrot.slane %v724, 5
  %v742 = vsel %vm304, %v740, %v741
  %743 = vrot.lane.b32.xlu0 %v742, 24
  %v744 = vpop.permute.xlu0 %743
  %v746 = vsel %vm356, %v473, %v733
  %vm747 = vcmask 130048
  %v748 = vsel %vm747, %v746, %v737
  %vm749 = vcmask 195584
  %v750 = vsel %vm749, %v748, %v744
  %v751 = vpack.c.bf16 %v750, %v750
  %v752 = vld [vmem:[%s1 + $0x40] sm:$0xf]
  %v753 = vld [vmem:[%s1 + $0x44] sm:$0xf]
  %v754 = vld [vmem:[%s1 + $0x48] sm:$0xf]
  %v755 = vld [vmem:[%s1 + $0x4c] sm:$0xf]
  %v760 = vunpack.c.l.b16 %v752
  %v761 = vunpack.c.l.b16 %v753
  %v762 = vunpack.c.l.b16 %v754
  %v763 = vunpack.c.l.b16 %v755
  %v764 = vpack.c.b16 %v761, %v760
  %v765 = vpack.c.b16 %v763, %v762
  %v769 = vsel %vm19, %v751, 0
  %771 = vmatprep.subr.bf16.mxu0 0
  %772 = vmatpush1.bf16.msra.mxu0 0
  %773 = vmatprep.subr.bf16.mxu0 0
  %774 = vmatpush1.bf16.msra.mxu0 0
  %775 = vmatprep.subr.bf16.mxu0 0
  %776 = vmatpush1.bf16.msra.mxu0 0
  %777 = vmatprep.subr.bf16.mxu0 0
  %778 = vmatpush1.bf16.msra.mxu0 0
  %779 = vmatprep.subr.bf16.mxu0 0
  %780 = vmatpush1.bf16.msra.mxu0 0
  %781 = vmatprep.subr.bf16.mxu0 0
  %782 = vmatpush1.bf16.msra.mxu0 0
  %783 = vmatprep.subr.bf16.mxu0 0
  %784 = vmatpush1.bf16.msra.mxu0 %v765
  %785 = vmatprep.subr.bf16.mxu0 0
  %786 = vmatpush1.bf16.msra.mxu0 %v764
  %787 = vmatprep.subr.bf16.mxu0 0
  %788 = vmatpush2.bf16.msra.mxu0 0
  %789 = vmatprep.subr.bf16.mxu0 0
  %790 = vmatpush2.bf16.msra.mxu0 0
  %791 = vmatprep.subr.bf16.mxu0 0
  %792 = vmatpush2.bf16.msra.mxu0 0
  %793 = vmatprep.subr.bf16.mxu0 0
  %794 = vmatpush2.bf16.msra.mxu0 0
  %795 = vmatprep.subr.bf16.mxu0 0
  %796 = vmatpush2.bf16.msra.mxu0 0
  %797 = vmatprep.subr.bf16.mxu0 0
  %798 = vmatpush2.bf16.msra.mxu0 0
  %799 = vmatprep.subr.bf16.mxu0 0
  %800 = vmatpush2.bf16.msra.mxu0 0
  %801 = vmatprep.subr.bf16.mxu0 0
  %802 = vmatpush2.bf16.msra.mxu0 0
  %803 = vmatprep.mubr.bf16.mxu0 0
  %804 = vmatmul.mubr.bf16.gmra.mxu0 %v769
  %v805 = vpop.f32.mrf.mxu0
  %v806 = vadd.f32 0.0, %v805
  %v807 = vpop.f32.mrf.mxu0
  %v808 = vpop.f32.mrf.mxu0
  %v809 = vpop.f32.mrf.mxu0
  %810 = vdwg.mxu0
  %v811 = vadd.f32 %v806, %v13
  %v812 = vmul.f32 %v811, %v811
  %v813 = vsel %vm23, %v812, 0.0
  %814 = vadd.xlane.f32.xlu0 %v813
  %v815 = vpop.xlane.xlu0 %814
  %v816 = vmul.f32 %v815, %v27
  %v817 = vadd.f32 %v816, 1e-06
  %v818 = vrsqrt.pop %v817
  %v819 = vmul.f32 %v811, %v818
  %821 = vrot.lane.b32.xlu0 %v13, 32
  %v822 = vpop.permute.xlu0 %821
  %v824 = vsel %vm19, %v819, %v822
  %826 = vrot.lane.b32.xlu0 %v16, 32
  %v827 = vpop.permute.xlu0 %826
  %v829 = vsel %vm19, %v819, %v827
  %v831 = vrot.slane %v829, 7
  %v833 = vsel %vm300, %v824, %v831
  %v834 = vpack.c.bf16 %v833, %v833
  %v835 = vld [vmem:[%s1 + $0x50] sm:$0xf]
  %v836 = vld [vmem:[%s1 + $0x54] sm:$0xf]
  %v837 = vld [vmem:[%s1 + $0x58] sm:$0xf]
  %v838 = vld [vmem:[%s1 + $0x5c] sm:$0xf]
  %v839 = vld [vmem:[%s1 + $0x60] sm:$0xf]
  %v840 = vld [vmem:[%s1 + $0x64] sm:$0xf]
  %v841 = vld [vmem:[%s1 + $0x68] sm:$0xf]
  %v842 = vld [vmem:[%s1 + $0x6c] sm:$0xf]
  %v851 = vunpack.c.l.b16 %v835
  %v852 = vunpack.c.l.b16 %v836
  %v853 = vunpack.c.l.b16 %v837
  %v854 = vunpack.c.l.b16 %v838
  %v855 = vunpack.c.l.b16 %v839
  %v856 = vunpack.c.l.b16 %v840
  %v857 = vunpack.c.l.b16 %v841
  %v858 = vunpack.c.l.b16 %v842
  %v859 = vpack.c.b16 %v852, %v851
  %v860 = vpack.c.b16 %v854, %v853
  %v861 = vpack.c.b16 %v856, %v855
  %v862 = vpack.c.b16 %v858, %v857
  %vm867 = vcmask 523264
  %v869 = vsel %vm867, %v834, 0
  %871 = vmatprep.subr.bf16.mxu0 0
  %872 = vmatpush1.bf16.msra.mxu0 0
  %873 = vmatprep.subr.bf16.mxu0 0
  %874 = vmatpush1.bf16.msra.mxu0 0
  %875 = vmatprep.subr.bf16.mxu0 0
  %876 = vmatpush1.bf16.msra.mxu0 0
  %877 = vmatprep.subr.bf16.mxu0 0
  %878 = vmatpush1.bf16.msra.mxu0 0
  %879 = vmatprep.subr.bf16.mxu0 0
  %880 = vmatpush1.bf16.msra.mxu0 %v862
  %881 = vmatprep.subr.bf16.mxu0 0
  %882 = vmatpush1.bf16.msra.mxu0 %v861
  %883 = vmatprep.subr.bf16.mxu0 0
  %884 = vmatpush1.bf16.msra.mxu0 %v860
  %885 = vmatprep.subr.bf16.mxu0 0
  %886 = vmatpush1.bf16.msra.mxu0 %v859
  %887 = vmatprep.subr.bf16.mxu0 0
  %888 = vmatpush2.bf16.msra.mxu0 0
  %889 = vmatprep.subr.bf16.mxu0 0
  %890 = vmatpush2.bf16.msra.mxu0 0
  %891 = vmatprep.subr.bf16.mxu0 0
  %892 = vmatpush2.bf16.msra.mxu0 0
  %893 = vmatprep.subr.bf16.mxu0 0
  %894 = vmatpush2.bf16.msra.mxu0 0
  %895 = vmatprep.subr.bf16.mxu0 0
  %896 = vmatpush2.bf16.msra.mxu0 0
  %897 = vmatprep.subr.bf16.mxu0 0
  %898 = vmatpush2.bf16.msra.mxu0 0
  %899 = vmatprep.subr.bf16.mxu0 0
  %900 = vmatpush2.bf16.msra.mxu0 0
  %901 = vmatprep.subr.bf16.mxu0 0
  %902 = vmatpush2.bf16.msra.mxu0 0
  %903 = vmatprep.mubr.bf16.mxu0 0
  %904 = vmatmul.mubr.bf16.gmra.mxu0 %v869
  %v905 = vpop.f32.mrf.mxu0
  %v906 = vadd.f32 0.0, %v905
  %v907 = vpop.f32.mrf.mxu0
  %v908 = vpop.f32.mrf.mxu0
  %v909 = vpop.f32.mrf.mxu0
  %910 = vdwg.mxu0
  %v911 = vsub.f32 0.0, %v906
  %v912 = vmul.f32 %v911, 1.442695
  %v913 = vpow.pop %v912
  %v914 = vadd.f32 %v913, 1.0
  %v915 = vrcp.pop %v914
  %v916 = vmul.f32 1.0, %v915
  %v917 = vmul.f32 %v906, %v916
  %v919 = vrot.slane %v906, 1
  %920 = vrot.lane.b32.xlu0 %v919, 64
  %v921 = vpop.permute.xlu0 %920
  %v923 = vmul.f32 %v917, %v921
  %v924 = vpack.c.bf16 %v923, %v923
  %v925 = vld [vmem:[%s1 + $0x70] sm:$0xf]
  %v926 = vld [vmem:[%s1 + $0x74] sm:$0xf]
  %v927 = vld [vmem:[%s1 + $0x78] sm:$0xf]
  %v928 = vld [vmem:[%s1 + $0x7c] sm:$0xf]
  %v929 = vld [vmem:[%s1 + $0x80] sm:$0xf]
  %v930 = vld [vmem:[%s1 + $0x84] sm:$0xf]
  %v931 = vld [vmem:[%s1 + $0x88] sm:$0xf]
  %v932 = vld [vmem:[%s1 + $0x8c] sm:$0xf]
  %v941 = vunpack.c.l.b16 %v925
  %v942 = vunpack.c.l.b16 %v926
  %v943 = vunpack.c.l.b16 %v927
  %v944 = vunpack.c.l.b16 %v928
  %v945 = vunpack.c.l.b16 %v929
  %v946 = vunpack.c.l.b16 %v930
  %v947 = vunpack.c.l.b16 %v931
  %v948 = vunpack.c.l.b16 %v932
  %v949 = vpack.c.b16 %v942, %v941
  %v950 = vpack.c.b16 %v944, %v943
  %v951 = vpack.c.b16 %v946, %v945
  %v952 = vpack.c.b16 %v948, %v947
  %v958 = vsel %vm867, %v924, 0
  %960 = vmatprep.subr.bf16.mxu0 0
  %961 = vmatpush1.bf16.msra.mxu0 0
  %962 = vmatprep.subr.bf16.mxu0 0
  %963 = vmatpush1.bf16.msra.mxu0 0
  %964 = vmatprep.subr.bf16.mxu0 0
  %965 = vmatpush1.bf16.msra.mxu0 0
  %966 = vmatprep.subr.bf16.mxu0 0
  %967 = vmatpush1.bf16.msra.mxu0 0
  %968 = vmatprep.subr.bf16.mxu0 0
  %969 = vmatpush1.bf16.msra.mxu0 %v952
  %970 = vmatprep.subr.bf16.mxu0 0
  %971 = vmatpush1.bf16.msra.mxu0 %v951
  %972 = vmatprep.subr.bf16.mxu0 0
  %973 = vmatpush1.bf16.msra.mxu0 %v950
  %974 = vmatprep.subr.bf16.mxu0 0
  %975 = vmatpush1.bf16.msra.mxu0 %v949
  %976 = vmatprep.subr.bf16.mxu0 0
  %977 = vmatpush2.bf16.msra.mxu0 0
  %978 = vmatprep.subr.bf16.mxu0 0
  %979 = vmatpush2.bf16.msra.mxu0 0
  %980 = vmatprep.subr.bf16.mxu0 0
  %981 = vmatpush2.bf16.msra.mxu0 0
  %982 = vmatprep.subr.bf16.mxu0 0
  %983 = vmatpush2.bf16.msra.mxu0 0
  %984 = vmatprep.subr.bf16.mxu0 0
  %985 = vmatpush2.bf16.msra.mxu0 0
  %986 = vmatprep.subr.bf16.mxu0 0
  %987 = vmatpush2.bf16.msra.mxu0 0
  %988 = vmatprep.subr.bf16.mxu0 0
  %989 = vmatpush2.bf16.msra.mxu0 0
  %990 = vmatprep.subr.bf16.mxu0 0
  %991 = vmatpush2.bf16.msra.mxu0 0
  %992 = vmatprep.mubr.bf16.mxu0 0
  %993 = vmatmul.mubr.bf16.gmra.mxu0 %v958
  %v994 = vpop.f32.mrf.mxu0
  %v995 = vadd.f32 %v811, %v994
  %v996 = vpop.f32.mrf.mxu0
  %v997 = vpop.f32.mrf.mxu0
  %v998 = vpop.f32.mrf.mxu0
  %999 = vdwg.mxu0
  %v1000 = vsel %vm300, %v995, %v806
  %vm1001 = vcmask 258048
  %1002 = vst.msk [vmem:[%s2] sm:$0x1f] %vm1001, %v1000
  // Predicated region
  $region10: #{xadaptive_decoder_layer.1} parent=0 // pred_check
    _
  $region11: #{xadaptive_decoder_layer.1} parent=0 // pred_check_branch
    %1004 = sbr.rel (0) target = $region13
  $region12: #{xadaptive_decoder_layer.1} parent=0 // pred_region
    _
  $region13: #{xadaptive_decoder_layer.1} parent=0 // pred_fallthru
    _
  // Predicated region
  $region14: #{xadaptive_decoder_layer.1} parent=0 // pred_check
    _
  $region15: #{xadaptive_decoder_layer.1} parent=0 // pred_check_branch
    %1006 = sbr.rel (0) target = $region17
  $region16: #{xadaptive_decoder_layer.1} parent=0 // pred_region
    _
  $region17: #{xadaptive_decoder_layer.1} parent=0 // pred_fallthru
    _

</llo_original>
